<compile_context>
chip_gen: v5e
topology: v5e:2x2
jax: 0.10.0
libtpu: 0.0.40
codegen_flags: <defaults>
</compile_context>

<pallas_src>
import jax
import jax.numpy as jnp
from jax.experimental import pallas as pl
from jax.experimental.pallas import tpu as pltpu


# ----------------------------------------------------------------------------
# Collective wrappers (single-device => identity, matching the PyTorch fast path)
# ----------------------------------------------------------------------------
def _gather_along_dim1(x, world_size: int = 1):
    if world_size == 1:
        return x
    # TODO(synk): multi-device all-gather via pltpu.make_async_remote_copy.
    raise NotImplementedError


def _reduce_scatter_along_dim1(x, world_size: int = 1):
    if world_size == 1:
        return x
    # TODO(synk): multi-device reduce-scatter not exercised in this single-device setup.
    raise NotImplementedError


# ----------------------------------------------------------------------------
# VMEM budget (generation-aware)
# ----------------------------------------------------------------------------
def _vmem_budget_bytes() -> int:
    try:
        info = pltpu.get_tpu_info()
        cap = getattr(info, "vmem_capacity_bytes", None) or getattr(info, "vmem_bytes", None)
        if cap:
            # 3/4 of physical: v5e/v6e (128 MiB) -> 96 MiB, v7x (64 MiB) -> 48 MiB.
            return int(min((int(cap) * 3) // 4, 100 * 1024 * 1024))
    except Exception:
        pass
    return 48 * 1024 * 1024  # safe on every current generation


# ----------------------------------------------------------------------------
# Tile selection: largest block <= target that divides `dim` and is a multiple
# of one of `aligns` (largest alignment first). Full extent when dim <= target.
# ----------------------------------------------------------------------------
def _pick_tile_aligned(dim: int, target: int, aligns) -> int:
    if dim <= target:
        return dim
    for a in aligns:
        t = (target // a) * a
        while t >= a:
            if dim % t == 0:
                return t
            t -= a
    return dim  # unreachable once dims are padded; guarded by the VMEM fit check


# ----------------------------------------------------------------------------
# Kernels
# ----------------------------------------------------------------------------
def _linear_resident_kernel(x_ref, w_ref, b_ref, o_ref):
    # Per-tile activation cast (tile is already in VMEM -> no extra HBM pass).
    y = jnp.dot(x_ref[...].astype(w_ref.dtype), w_ref[...],
                preferred_element_type=jnp.float32)
    o_ref[...] = (y + b_ref[...]).astype(o_ref.dtype)


def _linear_tiled_f32_kernel(x_ref, w_ref, b_ref, o_ref):
    # f32 output: the K-resident output tile IS the accumulator (no scratch).
    k = pl.program_id(2)

    @pl.when(k == 0)
    def _init():
        o_ref[...] = jnp.broadcast_to(b_ref[...], o_ref.shape)  # bias added exactly once

    o_ref[...] += jnp.dot(x_ref[...].astype(w_ref.dtype), w_ref[...],
                          preferred_element_type=jnp.float32)


def _linear_tiled_acc_kernel(x_ref, w_ref, b_ref, o_ref, acc_ref):
    # Narrow output dtype: accumulate in an f32 VMEM scratch, cast once at the end.
    k = pl.program_id(2)

    @pl.when(k == 0)
    def _init():
        acc_ref[...] = jnp.broadcast_to(b_ref[...], acc_ref.shape)

    acc_ref[...] += jnp.dot(x_ref[...].astype(w_ref.dtype), w_ref[...],
                            preferred_element_type=jnp.float32)

    @pl.when(k == pl.num_programs(2) - 1)
    def _fin():
        o_ref[...] = acc_ref[...].astype(o_ref.dtype)


# ----------------------------------------------------------------------------
# Parameter preparation (done once, amortizes to zero across forward calls):
#  - pad K/N to lane multiples (128) so block shapes are always legal,
#  - cast W to bf16 (MXU-native) and bias to a (1, N) f32 row.
# ----------------------------------------------------------------------------
def prepare_linear_params(w, b, use_bf16: bool = True):
    K, N = w.shape
    k_pad = -K % 128
    n_pad = -N % 128
    if k_pad or n_pad:
        w = jnp.pad(w, ((0, k_pad), (0, n_pad)))
        b = jnp.pad(b, ((0, n_pad),))
    if use_bf16 and w.dtype == jnp.float32:
        w = w.astype(jnp.bfloat16)
    b2d = b.astype(jnp.float32).reshape(1, -1)
    return w, b2d, N


# ----------------------------------------------------------------------------
# y = x2d @ W + b  (x2d: [M, K] unpadded, W: [Kp, Np] prepadded, b2d: [1, Np])
# ----------------------------------------------------------------------------
def linear_pallas(x2d, w_p, b2d, *, n_out=None,
                  tm_target=512, tn_target=512, tk_target=1024):
    M, K = x2d.shape
    Kp, Np = w_p.shape
    if n_out is None:
        n_out = Np
    out_dtype = x2d.dtype

    # Pad activations: contraction dim to the (padded) weight K, rows to a sublane multiple.
    k_pad = Kp - K
    m_pad = -M % 8
    if k_pad or m_pad:
        x2d = jnp.pad(x2d, ((0, m_pad), (0, k_pad)))
    Mp = M + m_pad

    budget = _vmem_budget_bytes()
    x_it = jnp.dtype(x2d.dtype).itemsize
    w_it = jnp.dtype(w_p.dtype).itemsize
    o_it = jnp.dtype(out_dtype).itemsize

    def _fits(tm_, tn_, tk_, acc_bytes=0):
        # Conservative: count double-buffering on every streamed operand + 2 MiB slack.
        need = (2 * tm_ * tk_ * x_it + 2 * tk_ * tn_ * w_it + 2 * tn_ * 4
                + 2 * tm_ * tn_ * o_it + acc_bytes)
        return need + (2 << 20) <= budget

    cost = pl.CostEstimate(
        flops=2 * Mp * Kp * Np,
        transcendentals=0,
        bytes_accessed=Mp * Kp * x_it + Kp * Np * w_it + Np * 4 + Mp * Np * o_it,
    )

    # ------------------------- resident-weight fast path -------------------------
    tm = _pick_tile_aligned(Mp, min(tm_target, Mp), (256, 128, 8))
    while not _fits(tm, Np, Kp) and tm > 8:
        smaller = _pick_tile_aligned(Mp, max(tm // 2, 8), (256, 128, 8))
        if smaller >= tm:
            break
        tm = smaller
    use_resident = _fits(tm, Np, Kp)

    if use_resident:
        # Prefer >= 2 M blocks for large M so both v7x TensorCores get work.
        if Mp // tm == 1 and Mp >= 256:
            half = _pick_tile_aligned(Mp, Mp // 2, (256, 128, 8))
            if half < Mp:
                tm = half

        out = pl.pallas_call(
            _linear_resident_kernel,
            out_shape=jax.ShapeDtypeStruct((Mp, Np), out_dtype),
            grid_spec=pltpu.PrefetchScalarGridSpec(
                num_scalar_prefetch=0,
                grid=(Mp // tm,),
                in_specs=[
                    pl.BlockSpec((tm, Kp), lambda i: (i, 0)),
                    pl.BlockSpec((Kp, Np), lambda i: (0, 0)),  # W resident: one HBM read
                    pl.BlockSpec((1, Np), lambda i: (0, 0)),
                ],
                out_specs=pl.BlockSpec((tm, Np), lambda i: (i, 0)),
            ),
            compiler_params=pltpu.CompilerParams(
                dimension_semantics=("parallel",),
                vmem_limit_bytes=budget,
            ),
            cost_estimate=cost,
        )(x2d, w_p, b2d)

    # ----------------------------- tiled K fallback ------------------------------
    else:
        f32_out = (out_dtype == jnp.float32)
        tm = _pick_tile_aligned(Mp, min(tm_target, Mp), (256, 128, 8))
        tn = _pick_tile_aligned(Np, min(tn_target, Np), (256, 128))
        tk = _pick_tile_aligned(Kp, min(tk_target, Kp), (256, 128))

        def tiled_fits(tm_, tn_, tk_):
            acc = 0 if f32_out else tm_ * tn_ * 4
            return _fits(tm_, tn_, tk_, acc_bytes=acc)

        for _ in range(32):
            if tiled_fits(tm, tn, tk):
                break
            if tk > 128:
                nk = _pick_tile_aligned(Kp, max(tk // 2, 128), (256, 128))
                if nk < tk:
                    tk = nk
                    continue
            if tn > 128:
                nn_ = _pick_tile_aligned(Np, max(tn // 2, 128), (256, 128))
                if nn_ < tn:
                    tn = nn_
                    continue
            if tm > 8:
                nm = _pick_tile_aligned(Mp, max(tm // 2, 8), (256, 128, 8))
                if nm < tm:
                    tm = nm
                    continue
            break

        grid = (Mp // tm, Np // tn, Kp // tk)  # reduction axis K last
        kernel = _linear_tiled_f32_kernel if f32_out else _linear_tiled_acc_kernel
        scratch = [] if f32_out else [pltpu.VMEM((tm, tn), jnp.float32)]

        out = pl.pallas_call(
            kernel,
            out_shape=jax.ShapeDtypeStruct((Mp, Np), out_dtype),
            grid_spec=pltpu.PrefetchScalarGridSpec(
                num_scalar_prefetch=0,
                grid=grid,
                in_specs=[
                    pl.BlockSpec((tm, tk), lambda i, j, k: (i, k)),
                    pl.BlockSpec((tk, tn), lambda i, j, k: (k, j)),
                    pl.BlockSpec((1, tn), lambda i, j, k: (0, j)),
                ],
                out_specs=pl.BlockSpec((tm, tn), lambda i, j, k: (i, j)),
                scratch_shapes=scratch,
            ),
            compiler_params=pltpu.CompilerParams(
                dimension_semantics=("parallel", "parallel", "arbitrary"),
                vmem_limit_bytes=budget,
            ),
            cost_estimate=cost,
        )(x2d, w_p, b2d)

    if Mp != M or Np != n_out:
        out = out[:M, :n_out]
    return out


# ----------------------------------------------------------------------------
# SequenceWarpper forward (functional)
# ----------------------------------------------------------------------------
def sequence_warpper_forward(hidden_states, w_p, b2d, n_out, world_size: int = 1):
    """hidden_states: [S, B, H] -> [S, B, H_out]"""
    inputs = _gather_along_dim1(hidden_states, world_size)       # _Gather.apply
    S, B, H = inputs.shape
    x2d = inputs.reshape(S * B, H)                               # lane-dense [M, H] slab
    y2d = linear_pallas(x2d, w_p, b2d, n_out=n_out)              # self.module(inputs)
    outputs = y2d.reshape(S, B, n_out)
    outputs = _reduce_scatter_along_dim1(outputs, world_size)    # _ReduceScatter.apply
    return outputs


if __name__ == "__main__":
    key = jax.random.PRNGKey(0)
    k_x, k_w, k_b = jax.random.split(key, 3)

    # S*B = 128 rows: one full MXU row pass, small test shape.
    S, B, H = 64, 2, 128
    x = jax.random.normal(k_x, (S, B, H), dtype=jnp.float32)

    # Wrapped nn.Linear(H, H): PyTorch weight is [out, in]; store transpose [in, out].
    w_torch_layout = jax.random.normal(k_w, (H, H), dtype=jnp.float32) * (1.0 / jnp.sqrt(H))
    w = w_torch_layout.T
    b = jax.random.normal(k_b, (H,), dtype=jnp.float32) * 0.01

    # One-time parameter preparation (bf16 weight cast + bias row + lane padding).
    w_p, b2d, n_out = prepare_linear_params(w, b, use_bf16=True)

    out = sequence_warpper_forward(x, w_p, b2d, n_out, world_size=1)
    out = jax.block_until_ready(out)

    # Pure-JAX reference with matching numerics (bf16-rounded operands, f32 accumulation).
    x2d = x.reshape(S * B, H)
    xr = x2d.astype(jnp.bfloat16).astype(jnp.float32)
    wr = w.astype(jnp.bfloat16).astype(jnp.float32)
    ref = (xr @ wr + b).reshape(S, B, H)

    assert out.shape == (S, B, H)
    assert jnp.allclose(out, ref, atol=2e-3, rtol=2e-3), "mismatch vs reference"

    print("KERNEL_OK")
</pallas_src>

<mosaic_0001>
module attributes {stable_mosaic.version = 11 : i64} {
  func.func @_linear_resident_kernel(%arg0: i32, %arg1: memref<128x128xf32, #tpu.memory_space<vmem>>, %arg2: memref<128x128xbf16, #tpu.memory_space<vmem>>, %arg3: memref<1x128xf32, #tpu.memory_space<vmem>>, %arg4: memref<128x128xf32, #tpu.memory_space<vmem>>) attributes {dimension_semantics = [#tpu.dimension_semantics<parallel>], iteration_bounds = array<i64: 1>, scalar_prefetch = 0 : i64, scratch_operands = 0 : i64, tpu.core_type = #tpu.core_type<tc>, window_params = [{transform_indices = @transform_0, window_bounds = array<i64: 128, 128>}, {pipeline_mode = #tpu.pipeline_mode<synchronous>, transform_indices = @transform_1, window_bounds = array<i64: 128, 128>}, {pipeline_mode = #tpu.pipeline_mode<synchronous>, transform_indices = @transform_2, window_bounds = array<i64: 1, 128>}, {transform_indices = @transform_3, window_bounds = array<i64: 128, 128>}]} {
    %c0 = arith.constant 0 : index
    %c0_0 = arith.constant 0 : index
    %0 = vector.load %arg1[%c0, %c0_0] : memref<128x128xf32, #tpu.memory_space<vmem>>, vector<128x128xf32>
    %1 = arith.truncf %0 : vector<128x128xf32> to vector<128x128xbf16>
    %c0_1 = arith.constant 0 : index
    %c0_2 = arith.constant 0 : index
    %2 = vector.load %arg2[%c0_1, %c0_2] : memref<128x128xbf16, #tpu.memory_space<vmem>>, vector<128x128xbf16>
    %cst = arith.constant dense<0.000000e+00> : vector<128x128xf32>
    %3 = tpu.matmul %1, %2, %cst {dimension_numbers = #tpu.dot_dimension_numbers<[1], [0], [0], [1], [0, 0, 1, 1], [], []>} : vector<128x128xbf16>, vector<128x128xbf16>, vector<128x128xf32> -> vector<128x128xf32>
    %c0_3 = arith.constant 0 : index
    %c0_4 = arith.constant 0 : index
    %4 = vector.load %arg3[%c0_3, %c0_4] : memref<1x128xf32, #tpu.memory_space<vmem>>, vector<1x128xf32>
    %5 = vector.broadcast %4 : vector<1x128xf32> to vector<128x128xf32>
    %6 = arith.addf %3, %5 : vector<128x128xf32>
    %c0_5 = arith.constant 0 : index
    %c0_6 = arith.constant 0 : index
    %7 = vector.load %arg4[%c0_5, %c0_6] : memref<128x128xf32, #tpu.memory_space<vmem>>, vector<128x128xf32>
    tpu.vector_store %arg4[%c0_5, %c0_6], %6 {strides = array<i32>} : memref<128x128xf32, #tpu.memory_space<vmem>>, vector<128x128xf32>,
    return
  }
  func.func @transform_0(%arg0: i32) -> (i32, i32) {
    %c0_i32 = arith.constant 0 : i32
    %c0_i32_0 = arith.constant 0 : i32
    return %arg0, %c0_i32 : i32, i32
  }
  func.func @transform_1(%arg0: i32) -> (i32, i32) {
    %c0_i32 = arith.constant 0 : i32
    %c0_i32_0 = arith.constant 0 : i32
    %c0_i32_1 = arith.constant 0 : i32
    return %c0_i32, %c0_i32_0 : i32, i32
  }
  func.func @transform_2(%arg0: i32) -> (i32, i32) {
    %c0_i32 = arith.constant 0 : i32
    %c0_i32_0 = arith.constant 0 : i32
    %c0_i32_1 = arith.constant 0 : i32
    return %c0_i32, %c0_i32_0 : i32, i32
  }
  func.func @transform_3(%arg0: i32) -> (i32, i32) {
    %c0_i32 = arith.constant 0 : i32
    %c0_i32_0 = arith.constant 0 : i32
    return %arg0, %c0_i32 : i32, i32
  }
}

</mosaic_0001>

<llo_original>
// kernel: tpu_custom_call.1
$region0: #{tpu_custom_call.1}
  #allocation0 [shape = 'u32[]', space=smem, size = 0x4, offset = 0x4, fixed_abs, tag = 'smem constant byte address 0x4 - core index']
  #allocation1 [shape = 'u32[72,128]{1,0:T(1,128)}', space=vmem, size = 0x9000, scoped, tag = 'internal scratch']
  %s0 = inlined_call_operand.hbm [shape: f32[128,128], index: 0, kind: input, shape index: {}]
  %s1 = inlined_call_operand.hbm [shape: bf16[128,128], index: 1, kind: input, shape index: {}]
  %s2 = inlined_call_operand.vmem [shape: f32[1,128], index: 2, kind: input, shape index: {}]
  %s3 = inlined_call_operand.hbm [shape: f32[128,128], index: 3, kind: output, shape index: {}]
  %s4 = sld [smem:[#allocation0]]
  $region30: #{tpu_custom_call.1} parent=0
    _
  %s6 = ssub.s32 1, %s4
  %s7 = scalar_select 0, %s6, %s4
  $region1: #{tpu_custom_call.1} parent=0
    #allocation2 [shape = 'u8[65536]{0}', space=vmem, size = 0x10000, scoped, tag = 'input window, operand 0, single buffered']
    #allocation3 [shape = 's32[1]{0}', space=sflag, size = 0x4, scoped, tag = 'scoped memory for tpu_custom_call.1']
    #allocation4 [shape = 's32[1]{0}', space=sflag, size = 0x4, scoped, tag = 'scoped memory for tpu_custom_call.1']
    #allocation5 [shape = 'u8[32768]{0}', space=vmem, size = 0x8000, scoped, tag = 'input window, operand 1, single buffered']
    #allocation6 [shape = 's32[1]{0}', space=sflag, size = 0x4, scoped, tag = 'scoped memory for tpu_custom_call.1']
    #allocation7 [shape = 'u8[65536]{0}', space=vmem, size = 0x10000, scoped, tag = 'output window, operand 0, single buffered']
    %8 = vsyncpa [#allocation3], 0
    %9 = vsyncpa [#allocation6], 0
    %10 = vsyncpa [#allocation4], 0
    // Predicated region
    $region2: #{tpu_custom_call.1} parent=1 // pred_check
      _
    $region3: #{tpu_custom_call.1} parent=1 // pred_check_branch
      %12 = sbr.rel (0) target = $region5
    $region4: #{tpu_custom_call.1} parent=1 // pred_region
      %14 = vsyncadd [#allocation3], 0
      %s15 = sshll.u32 %s0, 4
      %s16 = int_to_ptr.hbm [resolvable:$true] %s15
      %s17 = sshll.u32 [#allocation2], 4
      %s18 = int_to_ptr.vmem [resolvable:$true] %s17
      %23 = dma.hbm_to_vmem [thread:$0]  %s16, 2048, %s18, [#allocation3], 128, 128, 8
    $region5: #{tpu_custom_call.1} parent=1 // pred_fallthru
      _
    // Predicated region
    $region6: #{tpu_custom_call.1} parent=1 // pred_check
      _
    $region7: #{tpu_custom_call.1} parent=1 // pred_check_branch
      %25 = sbr.rel (0) target = $region9
    $region8: #{tpu_custom_call.1} parent=1 // pred_region
      %27 = vsyncadd [#allocation6], 0
      %s28 = sshll.u32 %s1, 4
      %s29 = int_to_ptr.hbm [resolvable:$true] %s28
      %s30 = sshll.u32 [#allocation5], 4
      %s31 = int_to_ptr.vmem [resolvable:$true] %s30
      %36 = dma.hbm_to_vmem [thread:$0]  %s29, 1024, %s31, [#allocation6], 64, 64, 4
    $region9: #{tpu_custom_call.1} parent=1 // pred_fallthru
      _
    // Predicated region
    $region10: #{tpu_custom_call.1} parent=1 // pred_check
      _
    $region11: #{tpu_custom_call.1} parent=1 // pred_check_branch
      %38 = sbr.rel (0) target = $region13
    $region12: #{tpu_custom_call.1} parent=1 // pred_region
      _
    $region13: #{tpu_custom_call.1} parent=1 // pred_fallthru
      _
    // Predicated region
    $region14: #{tpu_custom_call.1} parent=1 // pred_check
      _
    $region15: #{tpu_custom_call.1} parent=1 // pred_check_branch
      %40 = sbr.rel (0) target = $region17
    $region16: #{tpu_custom_call.1} parent=1 // pred_region
      %42 = dma.done [#allocation3], 2048
    $region17: #{tpu_custom_call.1} parent=1 // pred_fallthru
      _
    // Predicated region
    $region18: #{tpu_custom_call.1} parent=1 // pred_check
      _
    $region19: #{tpu_custom_call.1} parent=1 // pred_check_branch
      %44 = sbr.rel (0) target = $region21
    $region20: #{tpu_custom_call.1} parent=1 // pred_region
      %46 = dma.done [#allocation6], 1024
    $region21: #{tpu_custom_call.1} parent=1 // pred_fallthru
      _
    %v47 = vld [vmem:[#allocation2] sm:$0xff]
    %v48 = vld [vmem:[#allocation2 + $0x8] sm:$0xff]
    %v49 = vld [vmem:[#allocation2 + $0x10] sm:$0xff]
    %v50 = vld [vmem:[#allocation2 + $0x18] sm:$0xff]
    %v51 = vld [vmem:[#allocation2 + $0x20] sm:$0xff]
    %v52 = vld [vmem:[#allocation2 + $0x28] sm:$0xff]
    %v53 = vld [vmem:[#allocation2 + $0x30] sm:$0xff]
    %v54 = vld [vmem:[#allocation2 + $0x38] sm:$0xff]
    %v55 = vld [vmem:[#allocation2 + $0x40] sm:$0xff]
    %v56 = vld [vmem:[#allocation2 + $0x48] sm:$0xff]
    %v57 = vld [vmem:[#allocation2 + $0x50] sm:$0xff]
    %v58 = vld [vmem:[#allocation2 + $0x58] sm:$0xff]
    %v59 = vld [vmem:[#allocation2 + $0x60] sm:$0xff]
    %v60 = vld [vmem:[#allocation2 + $0x68] sm:$0xff]
    %v61 = vld [vmem:[#allocation2 + $0x70] sm:$0xff]
    %v62 = vld [vmem:[#allocation2 + $0x78] sm:$0xff]
    %v63 = vpack.c.bf16 %v48, %v47
    %v64 = vpack.c.bf16 %v50, %v49
    %v65 = vpack.c.bf16 %v52, %v51
    %v66 = vpack.c.bf16 %v54, %v53
    %v67 = vpack.c.bf16 %v56, %v55
    %v68 = vpack.c.bf16 %v58, %v57
    %v69 = vpack.c.bf16 %v60, %v59
    %v70 = vpack.c.bf16 %v62, %v61
    %v71 = vld [vmem:[#allocation5] sm:$0xf]
    %v72 = vld [vmem:[#allocation5 + $0x4] sm:$0xf]
    %v73 = vld [vmem:[#allocation5 + $0x8] sm:$0xf]
    %v74 = vld [vmem:[#allocation5 + $0xc] sm:$0xf]
    %v75 = vld [vmem:[#allocation5 + $0x10] sm:$0xf]
    %v76 = vld [vmem:[#allocation5 + $0x14] sm:$0xf]
    %v77 = vld [vmem:[#allocation5 + $0x18] sm:$0xf]
    %v78 = vld [vmem:[#allocation5 + $0x1c] sm:$0xf]
    %v79 = vld [vmem:[#allocation5 + $0x20] sm:$0xf]
    %v80 = vld [vmem:[#allocation5 + $0x24] sm:$0xf]
    %v81 = vld [vmem:[#allocation5 + $0x28] sm:$0xf]
    %v82 = vld [vmem:[#allocation5 + $0x2c] sm:$0xf]
    %v83 = vld [vmem:[#allocation5 + $0x30] sm:$0xf]
    %v84 = vld [vmem:[#allocation5 + $0x34] sm:$0xf]
    %v85 = vld [vmem:[#allocation5 + $0x38] sm:$0xf]
    %v86 = vld [vmem:[#allocation5 + $0x3c] sm:$0xf]
    %v87 = vld [vmem:[%s2] sm:$0x1]
    %v89 = vperm.slane %v87, 0
    %v107 = vunpack.c.l.b16 %v71
    %v108 = vunpack.c.l.b16 %v72
    %v109 = vunpack.c.l.b16 %v73
    %v110 = vunpack.c.l.b16 %v74
    %v111 = vunpack.c.l.b16 %v75
    %v112 = vunpack.c.l.b16 %v76
    %v113 = vunpack.c.l.b16 %v77
    %v114 = vunpack.c.l.b16 %v78
    %v115 = vunpack.c.l.b16 %v79
    %v116 = vunpack.c.l.b16 %v80
    %v117 = vunpack.c.l.b16 %v81
    %v118 = vunpack.c.l.b16 %v82
    %v119 = vunpack.c.l.b16 %v83
    %v120 = vunpack.c.l.b16 %v84
    %v121 = vunpack.c.l.b16 %v85
    %v122 = vunpack.c.l.b16 %v86
    %v123 = vpack.c.b16 %v108, %v107
    %v124 = vpack.c.b16 %v110, %v109
    %v125 = vpack.c.b16 %v112, %v111
    %v126 = vpack.c.b16 %v114, %v113
    %v127 = vpack.c.b16 %v116, %v115
    %v128 = vpack.c.b16 %v118, %v117
    %v129 = vpack.c.b16 %v120, %v119
    %v130 = vpack.c.b16 %v122, %v121
    %139 = vmatpush.bf16.msra.mxu0 %v130
    %140 = vmatpush.bf16.msra.mxu0 %v129
    %141 = vmatpush.bf16.msra.mxu0 %v128
    %142 = vmatpush.bf16.msra.mxu0 %v127
    %143 = vmatpush.bf16.msra.mxu0 %v126
    %144 = vmatpush.bf16.msra.mxu0 %v125
    %145 = vmatpush.bf16.msra.mxu0 %v124
    %146 = vmatpush.bf16.msra.mxu0 %v123
    %147 = vmatmul.bf16.gmra.mxu0 %v63
    %v148 = vpop.f32.mrf.mxu0
    %v149 = vadd.f32 %v89, %v148
    %v150 = vpop.f32.mrf.mxu0
    %v151 = vadd.f32 %v89, %v150
    %152 = vmatmul.bf16.gmra.mxu0 %v64
    %v153 = vpop.f32.mrf.mxu0
    %v154 = vadd.f32 %v89, %v153
    %v155 = vpop.f32.mrf.mxu0
    %v156 = vadd.f32 %v89, %v155
    %157 = vmatmul.bf16.gmra.mxu0 %v65
    %v158 = vpop.f32.mrf.mxu0
    %v159 = vadd.f32 %v89, %v158
    %v160 = vpop.f32.mrf.mxu0
    %v161 = vadd.f32 %v89, %v160
    %162 = vmatmul.bf16.gmra.mxu0 %v66
    %v163 = vpop.f32.mrf.mxu0
    %v164 = vadd.f32 %v89, %v163
    %v165 = vpop.f32.mrf.mxu0
    %v166 = vadd.f32 %v89, %v165
    %167 = vmatmul.bf16.gmra.mxu0 %v67
    %v168 = vpop.f32.mrf.mxu0
    %v169 = vadd.f32 %v89, %v168
    %v170 = vpop.f32.mrf.mxu0
    %v171 = vadd.f32 %v89, %v170
    %172 = vmatmul.bf16.gmra.mxu0 %v68
    %v173 = vpop.f32.mrf.mxu0
    %v174 = vadd.f32 %v89, %v173
    %v175 = vpop.f32.mrf.mxu0
    %v176 = vadd.f32 %v89, %v175
    %177 = vmatmul.bf16.gmra.mxu0 %v69
    %v178 = vpop.f32.mrf.mxu0
    %v179 = vadd.f32 %v89, %v178
    %v180 = vpop.f32.mrf.mxu0
    %v181 = vadd.f32 %v89, %v180
    %182 = vmatmul.bf16.gmra.mxu0 %v70
    %v183 = vpop.f32.mrf.mxu0
    %v184 = vadd.f32 %v89, %v183
    %v185 = vpop.f32.mrf.mxu0
    %v186 = vadd.f32 %v89, %v185
    %187 = vdwg.mxu0
    %188 = vst [vmem:[#allocation7] sm:$0xff] %v149
    %189 = vst [vmem:[#allocation7 + $0x8] sm:$0xff] %v151
    %190 = vst [vmem:[#allocation7 + $0x10] sm:$0xff] %v154
    %191 = vst [vmem:[#allocation7 + $0x18] sm:$0xff] %v156
    %192 = vst [vmem:[#allocation7 + $0x20] sm:$0xff] %v159
    %193 = vst [vmem:[#allocation7 + $0x28] sm:$0xff] %v161
    %194 = vst [vmem:[#allocation7 + $0x30] sm:$0xff] %v164
    %195 = vst [vmem:[#allocation7 + $0x38] sm:$0xff] %v166
    %196 = vst [vmem:[#allocation7 + $0x40] sm:$0xff] %v169
    %197 = vst [vmem:[#allocation7 + $0x48] sm:$0xff] %v171
    %198 = vst [vmem:[#allocation7 + $0x50] sm:$0xff] %v174
    %199 = vst [vmem:[#allocation7 + $0x58] sm:$0xff] %v176
    %200 = vst [vmem:[#allocation7 + $0x60] sm:$0xff] %v179
    %201 = vst [vmem:[#allocation7 + $0x68] sm:$0xff] %v181
    %202 = vst [vmem:[#allocation7 + $0x70] sm:$0xff] %v184
    %203 = vst [vmem:[#allocation7 + $0x78] sm:$0xff] %v186
    // Predicated region
    $region22: #{tpu_custom_call.1} parent=1 // pred_check
      _
    $region23: #{tpu_custom_call.1} parent=1 // pred_check_branch
      %205 = sbr.rel (0) target = $region25
    $region24: #{tpu_custom_call.1} parent=1 // pred_region
      %207 = vsyncadd [#allocation4], 0
      %s208 = sshll.u32 [#allocation7], 4
      %s209 = int_to_ptr.vmem [resolvable:$true] %s208
      %s210 = sshll.u32 %s3, 4
      %s211 = int_to_ptr.hbm [resolvable:$true] %s210
      %216 = dma.vmem_to_hbm [thread:$0]  %s209, 2048, %s211, [#allocation4], 128, 128, 8
    $region25: #{tpu_custom_call.1} parent=1 // pred_fallthru
      _
    // Predicated region
    $region26: #{tpu_custom_call.1} parent=1 // pred_check
      _
    $region27: #{tpu_custom_call.1} parent=1 // pred_check_branch
      %218 = sbr.rel (0) target = $region29
    $region28: #{tpu_custom_call.1} parent=1 // pred_region
      %220 = dma.done [#allocation4], 2048
    $region29: #{tpu_custom_call.1} parent=1 // pred_fallthru
      _
    %221 = vsyncpa [#allocation3], 1
    %222 = vsyncpa [#allocation6], 1
    %223 = vsyncpa [#allocation4], 1

</llo_original>
